<compile_context>
chip_gen: v7x
topology: tpu7x:2x2x1
jax: 0.10.0
libtpu: 0.0.40
codegen_flags: <defaults>
</compile_context>

<pallas_src>
import functools

import jax
import jax.numpy as jnp
import numpy as np
from jax.experimental import pallas as pl
from jax.experimental.pallas import tpu as pltpu


def gat_fused_kernel(src_col_ref, src_row_ref, dst_col_ref, x_ref, w_ref,
                     a_src_ref, a_dst_ref, rep_ref, out_ref, *, alpha):
    # src_col_ref : (E, 1) int32    edge source ids (column form, for S/D build)
    # src_row_ref : (1, E) int32    edge source ids (row form, for transposed S)
    # dst_col_ref : (E, 1) int32    edge destination ids
    # x_ref       : (N, F_in) f32   node features
    # w_ref       : (F_in, H*F_out) f32   all heads' W, packed column-wise
    # a_src_ref   : (H*F_out, H) f32      block-diagonal src-half attention vecs
    # a_dst_ref   : (H*F_out, H) f32      block-diagonal dst-half attention vecs
    # rep_ref     : (H, H*F_out) f32      head -> F_out-lane repeat matrix
    # out_ref     : (N, H*F_out) f32      concat-layout output
    E = src_col_ref.shape[0]
    N = x_ref.shape[0]

    x = x_ref[...]                                                     # (N, F_in)
    W_all = w_ref[...]                                                 # (F_in, HF)

    # Wh for every head at once (MXU).
    Wh = jnp.dot(x, W_all, preferred_element_type=jnp.float32)         # (N, HF)

    # Per-node logit contributions for all heads (two small MXU matmuls; avoids
    # sub-lane-width column slicing of a fused (N, 2H) result).
    s_src = jnp.dot(Wh, a_src_ref[...], preferred_element_type=jnp.float32)  # (N, H)
    s_dst = jnp.dot(Wh, a_dst_ref[...], preferred_element_type=jnp.float32)  # (N, H)

    # One-hot gather / scatter matrices, built once for all heads (VPU compares
    # against lane/sublane iotas; no HBM traffic beyond the E int32 ids).
    node_en = jax.lax.broadcasted_iota(jnp.int32, (E, N), 1)
    S = (src_col_ref[...] == node_en).astype(jnp.float32)              # (E, N)
    D = (dst_col_ref[...] == node_en).astype(jnp.float32)              # (E, N)
    node_ne = jax.lax.broadcasted_iota(jnp.int32, (N, E), 0)
    S_T = (src_row_ref[...] == node_ne).astype(jnp.float32)            # (N, E)

    # e = LeakyReLU(s_src[src] + s_dst[dst]) -- gathers as MXU matmuls.
    e = (jnp.dot(S, s_src, preferred_element_type=jnp.float32) +
         jnp.dot(D, s_dst, preferred_element_type=jnp.float32))        # (E, H)
    e = jnp.where(e > 0, e, alpha * e)                                 # LeakyReLU

    # Softmax over ALL edges (dim=0), per head -- matches the reference module.
    m = jnp.max(e, axis=0, keepdims=True)                              # (1, H)
    p = jnp.exp(e - m)                                                 # (E, H)
    denom = jnp.sum(p, axis=0, keepdims=True)                          # (1, H)
    inv = pl.reciprocal(denom, approx=True)                            # EUP slot
    inv = inv * (2.0 - denom * inv)                                    # one Newton step
    att = p * inv                                                      # (E, H)

    # Expand att (E,H) -> (E,HF) on the MXU: repeat each head column F_out x.
    att_wide = jnp.dot(att, rep_ref[...],
                       preferred_element_type=jnp.float32)             # (E, HF)

    # Messages and scatter-add over src (S_T already transposed -> plain MXU).
    Wh_dst = jnp.dot(D, Wh, preferred_element_type=jnp.float32)        # (E, HF)
    msg = att_wide * Wh_dst                                            # (E, HF)
    h_prime = jnp.dot(S_T, msg, preferred_element_type=jnp.float32)    # (N, HF)

    # ELU (alpha=1.0); clamp avoids exp of large positives in the dead branch.
    out_ref[...] = jnp.where(h_prime > 0.0, h_prime,
                             jnp.exp(jnp.minimum(h_prime, 0.0)) - 1.0)


def multi_head_gat(x, edge_index, W, a, *, alpha=0.2):
    """x: (N,F_in) f32, edge_index: (2,E) int32, W: (H,F_in,F_out), a: (H,2*F_out)."""
    N, F_in = x.shape
    H, _, F_out = W.shape
    HF = H * F_out
    E = edge_index.shape[1]

    src = edge_index[0].astype(jnp.int32)
    dst = edge_index[1].astype(jnp.int32)
    src_col = src.reshape(E, 1)
    src_row = src.reshape(1, E)
    dst_col = dst.reshape(E, 1)

    # Pack per-head weights: columns [h*F_out, (h+1)*F_out) belong to head h,
    # i.e. exactly the torch.cat(dim=1) concat layout.
    W_all = jnp.transpose(W, (1, 0, 2)).reshape(F_in, HF)

    # Block-diagonal attention-vector matrices (HF, H):
    #   a_src_blk[h*F_out + f, h] = a[h, f]
    #   a_dst_blk[h*F_out + f, h] = a[h, F_out + f]
    a_src = a[:, :F_out]                                               # (H, F_out)
    a_dst = a[:, F_out:]                                               # (H, F_out)
    eye = jnp.eye(H, dtype=a.dtype)
    a_src_blk = (a_src[:, :, None] * eye[:, None, :]).reshape(HF, H)
    a_dst_blk = (a_dst[:, :, None] * eye[:, None, :]).reshape(HF, H)

    # Head -> F_out-lane repeat matrix (H, HF): rep[h, h*F_out:(h+1)*F_out] = 1.
    rep = jnp.repeat(eye, F_out, axis=1).astype(jnp.float32)           # (H, HF)

    kernel = functools.partial(gat_fused_kernel, alpha=alpha)

    return pl.pallas_call(
        kernel,
        out_shape=jax.ShapeDtypeStruct((N, HF), jnp.float32),
        grid_spec=pltpu.PrefetchScalarGridSpec(
            num_scalar_prefetch=0,
            grid=(1,),
            in_specs=[
                pl.BlockSpec((E, 1), lambda i: (0, 0)),        # src ids (column)
                pl.BlockSpec((1, E), lambda i: (0, 0)),        # src ids (row)
                pl.BlockSpec((E, 1), lambda i: (0, 0)),        # dst ids (column)
                pl.BlockSpec((N, F_in), lambda i: (0, 0)),     # node features
                pl.BlockSpec((F_in, HF), lambda i: (0, 0)),    # packed W
                pl.BlockSpec((HF, H), lambda i: (0, 0)),       # packed a (src half)
                pl.BlockSpec((HF, H), lambda i: (0, 0)),       # packed a (dst half)
                pl.BlockSpec((H, HF), lambda i: (0, 0)),       # repeat matrix
            ],
            out_specs=pl.BlockSpec((N, HF), lambda i: (0, 0)),
        ),
        compiler_params=pltpu.CompilerParams(
            dimension_semantics=("arbitrary",)),
    )(src_col, src_row, dst_col, x, W_all, a_src_blk, a_dst_blk, rep)


def reference_multi_head_gat(x, edge_index, W, a, *, alpha=0.2):
    """Pure-JAX reference mirroring the PyTorch module (eval mode)."""
    src, dst = edge_index[0], edge_index[1]
    H = W.shape[0]
    outs = []
    for h in range(H):
        Wh = x @ W[h]
        a_input = jnp.concatenate([Wh[src], Wh[dst]], axis=1)
        e = a_input @ a[h]
        e = jnp.where(e > 0, e, alpha * e)
        att = jax.nn.softmax(e, axis=0)
        msg = Wh[dst] * att[:, None]
        h_prime = jnp.zeros_like(Wh).at[src].add(msg)
        outs.append(jax.nn.elu(h_prime))
    return jnp.concatenate(outs, axis=1)


def xavier_uniform(key, shape, gain):
    fan_in, fan_out = shape[-2], shape[-1]
    bound = gain * (6.0 / (fan_in + fan_out)) ** 0.5
    return jax.random.uniform(key, shape, jnp.float32, -bound, bound)


if __name__ == "__main__":
    # Small, module-consistent shapes.
    N, F_in, F_out, H, E = 16, 16, 8, 4, 32
    alpha = 0.2

    key = jax.random.PRNGKey(0)
    k_w, k_a, k_x, k_e = jax.random.split(key, 4)

    # Deterministic parameter init (shapes from SingleHeadGATConv.__init__).
    W = xavier_uniform(k_w, (H, F_in, F_out), gain=1.414)            # per-head W
    a = xavier_uniform(k_a, (H, 2 * F_out, 1), gain=1.414)[..., 0]   # per-head a

    x = jax.random.normal(k_x, (N, F_in), jnp.float32)
    edge_index = jax.random.randint(k_e, (2, E), 0, N, jnp.int32)

    out = multi_head_gat(x, edge_index, W, a, alpha=alpha)
    out = jax.block_until_ready(out)

    ref = reference_multi_head_gat(x, edge_index, W, a, alpha=alpha)
    # Tolerance slightly relaxed vs exact divide: softmax uses the EUP approx
    # reciprocal (+ one Newton refinement step).
    np.testing.assert_allclose(np.asarray(out), np.asarray(ref),
                               rtol=1e-3, atol=1e-3)
    assert out.shape == (N, H * F_out)

    print("KERNEL_OK")
</pallas_src>

<mosaic_0001>
module attributes {stable_mosaic.version = 11 : i64} {
  func.func @gat_fused_kernel(%arg0: i32, %arg1: memref<32x1xi32, #tpu.memory_space<vmem>>, %arg2: memref<1x32xi32, #tpu.memory_space<vmem>>, %arg3: memref<32x1xi32, #tpu.memory_space<vmem>>, %arg4: memref<16x16xf32, #tpu.memory_space<vmem>>, %arg5: memref<16x32xf32, #tpu.memory_space<vmem>>, %arg6: memref<32x4xf32, #tpu.memory_space<vmem>>, %arg7: memref<32x4xf32, #tpu.memory_space<vmem>>, %arg8: memref<4x32xf32, #tpu.memory_space<vmem>>, %arg9: memref<16x32xf32, #tpu.memory_space<vmem>>) attributes {dimension_semantics = [#tpu.dimension_semantics<arbitrary>], iteration_bounds = array<i64: 1>, scalar_prefetch = 0 : i64, scratch_operands = 0 : i64, tpu.core_type = #tpu.core_type<tc>, window_params = [{pipeline_mode = #tpu.pipeline_mode<synchronous>, transform_indices = @transform_0, window_bounds = array<i64: 32, 1>}, {pipeline_mode = #tpu.pipeline_mode<synchronous>, transform_indices = @transform_1, window_bounds = array<i64: 1, 32>}, {pipeline_mode = #tpu.pipeline_mode<synchronous>, transform_indices = @transform_2, window_bounds = array<i64: 32, 1>}, {pipeline_mode = #tpu.pipeline_mode<synchronous>, transform_indices = @transform_3, window_bounds = array<i64: 16, 16>}, {pipeline_mode = #tpu.pipeline_mode<synchronous>, transform_indices = @transform_4, window_bounds = array<i64: 16, 32>}, {pipeline_mode = #tpu.pipeline_mode<synchronous>, transform_indices = @transform_5, window_bounds = array<i64: 32, 4>}, {pipeline_mode = #tpu.pipeline_mode<synchronous>, transform_indices = @transform_6, window_bounds = array<i64: 32, 4>}, {pipeline_mode = #tpu.pipeline_mode<synchronous>, transform_indices = @transform_7, window_bounds = array<i64: 4, 32>}, {pipeline_mode = #tpu.pipeline_mode<synchronous>, transform_indices = @transform_8, window_bounds = array<i64: 16, 32>}]} {
    %c0 = arith.constant 0 : index
    %c0_0 = arith.constant 0 : index
    %0 = vector.load %arg4[%c0, %c0_0] : memref<16x16xf32, #tpu.memory_space<vmem>>, vector<16x16xf32>
    %c0_1 = arith.constant 0 : index
    %c0_2 = arith.constant 0 : index
    %1 = vector.load %arg5[%c0_1, %c0_2] : memref<16x32xf32, #tpu.memory_space<vmem>>, vector<16x32xf32>
    %cst = arith.constant dense<0.000000e+00> : vector<16x32xf32>
    %2 = tpu.matmul %0, %1, %cst {dimension_numbers = #tpu.dot_dimension_numbers<[1], [0], [0], [1], [0, 0, 1, 1], [], []>} : vector<16x16xf32>, vector<16x32xf32>, vector<16x32xf32> -> vector<16x32xf32>
    %c0_3 = arith.constant 0 : index
    %c0_4 = arith.constant 0 : index
    %3 = vector.load %arg6[%c0_3, %c0_4] : memref<32x4xf32, #tpu.memory_space<vmem>>, vector<32x4xf32>
    %cst_5 = arith.constant dense<0.000000e+00> : vector<16x4xf32>
    %4 = tpu.matmul %2, %3, %cst_5 {dimension_numbers = #tpu.dot_dimension_numbers<[1], [0], [0], [1], [0, 0, 1, 1], [], []>} : vector<16x32xf32>, vector<32x4xf32>, vector<16x4xf32> -> vector<16x4xf32>
    %c0_6 = arith.constant 0 : index
    %c0_7 = arith.constant 0 : index
    %5 = vector.load %arg7[%c0_6, %c0_7] : memref<32x4xf32, #tpu.memory_space<vmem>>, vector<32x4xf32>
    %cst_8 = arith.constant dense<0.000000e+00> : vector<16x4xf32>
    %6 = tpu.matmul %2, %5, %cst_8 {dimension_numbers = #tpu.dot_dimension_numbers<[1], [0], [0], [1], [0, 0, 1, 1], [], []>} : vector<16x32xf32>, vector<32x4xf32>, vector<16x4xf32> -> vector<16x4xf32>
    %7 = tpu.iota {dimensions = array<i32: 1>} : vector<32x16xi32>
    %c0_9 = arith.constant 0 : index
    %c0_10 = arith.constant 0 : index
    %8 = vector.load %arg1[%c0_9, %c0_10] : memref<32x1xi32, #tpu.memory_space<vmem>>, vector<32x1xi32>
    %9 = vector.broadcast %8 : vector<32x1xi32> to vector<32x16xi32>
    %10 = arith.cmpi eq, %9, %7 : vector<32x16xi32>
    %11 = arith.extui %10 : vector<32x16xi1> to vector<32x16xi32>
    %12 = arith.sitofp %11 : vector<32x16xi32> to vector<32x16xf32>
    %c0_11 = arith.constant 0 : index
    %c0_12 = arith.constant 0 : index
    %13 = vector.load %arg3[%c0_11, %c0_12] : memref<32x1xi32, #tpu.memory_space<vmem>>, vector<32x1xi32>
    %14 = vector.broadcast %13 : vector<32x1xi32> to vector<32x16xi32>
    %15 = arith.cmpi eq, %14, %7 : vector<32x16xi32>
    %16 = arith.extui %15 : vector<32x16xi1> to vector<32x16xi32>
    %17 = arith.sitofp %16 : vector<32x16xi32> to vector<32x16xf32>
    %18 = tpu.iota {dimensions = array<i32: 0>} : vector<16x32xi32>
    %c0_13 = arith.constant 0 : index
    %c0_14 = arith.constant 0 : index
    %19 = vector.load %arg2[%c0_13, %c0_14] : memref<1x32xi32, #tpu.memory_space<vmem>>, vector<1x32xi32>
    %20 = vector.broadcast %19 : vector<1x32xi32> to vector<16x32xi32>
    %21 = arith.cmpi eq, %20, %18 : vector<16x32xi32>
    %22 = arith.extui %21 : vector<16x32xi1> to vector<16x32xi32>
    %23 = arith.sitofp %22 : vector<16x32xi32> to vector<16x32xf32>
    %cst_15 = arith.constant dense<0.000000e+00> : vector<32x4xf32>
    %24 = tpu.matmul %12, %4, %cst_15 {dimension_numbers = #tpu.dot_dimension_numbers<[1], [0], [0], [1], [0, 0, 1, 1], [], []>} : vector<32x16xf32>, vector<16x4xf32>, vector<32x4xf32> -> vector<32x4xf32>
    %cst_16 = arith.constant dense<0.000000e+00> : vector<32x4xf32>
    %25 = tpu.matmul %17, %6, %cst_16 {dimension_numbers = #tpu.dot_dimension_numbers<[1], [0], [0], [1], [0, 0, 1, 1], [], []>} : vector<32x16xf32>, vector<16x4xf32>, vector<32x4xf32> -> vector<32x4xf32>
    %26 = arith.addf %24, %25 : vector<32x4xf32>
    %cst_17 = arith.constant 0.000000e+00 : f32
    %27 = vector.broadcast %cst_17 : f32 to vector<32x4xf32>
    %28 = arith.cmpf ogt, %26, %27 : vector<32x4xf32>
    %cst_18 = arith.constant 2.000000e-01 : f32
    %29 = vector.broadcast %cst_18 : f32 to vector<32x4xf32>
    %30 = arith.mulf %29, %26 : vector<32x4xf32>
    %31 = arith.select %28, %26, %30 : vector<32x4xi1>, vector<32x4xf32>
    %cst_19 = arith.constant dense<0xFF800000> : vector<4xf32>
    %32 = vector.multi_reduction <maximumf>, %31, %cst_19 [0] : vector<32x4xf32> to vector<4xf32>
    %33 = vector.shape_cast %32 : vector<4xf32> to vector<1x4xf32>
    %34 = vector.broadcast %33 : vector<1x4xf32> to vector<32x4xf32>
    %35 = arith.subf %31, %34 : vector<32x4xf32>
    %36 = math.exp %35 : vector<32x4xf32>
    %cst_20 = arith.constant dense<0.000000e+00> : vector<4xf32>
    %37 = vector.multi_reduction <add>, %36, %cst_20 [0] : vector<32x4xf32> to vector<4xf32>
    %38 = vector.shape_cast %37 : vector<4xf32> to vector<1x4xf32>
    %39 = tpu.reciprocal %38 {approx = true} : vector<1x4xf32> -> vector<1x4xf32>
    %40 = arith.mulf %38, %39 : vector<1x4xf32>
    %cst_21 = arith.constant 2.000000e+00 : f32
    %41 = vector.broadcast %cst_21 : f32 to vector<1x4xf32>
    %42 = arith.subf %41, %40 : vector<1x4xf32>
    %43 = arith.mulf %39, %42 : vector<1x4xf32>
    %44 = vector.broadcast %43 : vector<1x4xf32> to vector<32x4xf32>
    %45 = arith.mulf %36, %44 : vector<32x4xf32>
    %c0_22 = arith.constant 0 : index
    %c0_23 = arith.constant 0 : index
    %46 = vector.load %arg8[%c0_22, %c0_23] : memref<4x32xf32, #tpu.memory_space<vmem>>, vector<4x32xf32>
    %cst_24 = arith.constant dense<0.000000e+00> : vector<32x32xf32>
    %47 = tpu.matmul %45, %46, %cst_24 {dimension_numbers = #tpu.dot_dimension_numbers<[1], [0], [0], [1], [0, 0, 1, 1], [], []>} : vector<32x4xf32>, vector<4x32xf32>, vector<32x32xf32> -> vector<32x32xf32>
    %cst_25 = arith.constant dense<0.000000e+00> : vector<32x32xf32>
    %48 = tpu.matmul %17, %2, %cst_25 {dimension_numbers = #tpu.dot_dimension_numbers<[1], [0], [0], [1], [0, 0, 1, 1], [], []>} : vector<32x16xf32>, vector<16x32xf32>, vector<32x32xf32> -> vector<32x32xf32>
    %49 = arith.mulf %47, %48 : vector<32x32xf32>
    %cst_26 = arith.constant dense<0.000000e+00> : vector<16x32xf32>
    %50 = tpu.matmul %23, %49, %cst_26 {dimension_numbers = #tpu.dot_dimension_numbers<[1], [0], [0], [1], [0, 0, 1, 1], [], []>} : vector<16x32xf32>, vector<32x32xf32>, vector<16x32xf32> -> vector<16x32xf32>
    %cst_27 = arith.constant 0.000000e+00 : f32
    %51 = vector.broadcast %cst_27 : f32 to vector<16x32xf32>
    %52 = arith.cmpf ogt, %50, %51 : vector<16x32xf32>
    %cst_28 = arith.constant 0.000000e+00 : f32
    %53 = vector.broadcast %cst_28 : f32 to vector<16x32xf32>
    %54 = arith.minimumf %50, %53 : vector<16x32xf32>
    %55 = math.exp %54 : vector<16x32xf32>
    %cst_29 = arith.constant 1.000000e+00 : f32
    %56 = vector.broadcast %cst_29 : f32 to vector<16x32xf32>
    %57 = arith.subf %55, %56 : vector<16x32xf32>
    %58 = arith.select %52, %50, %57 : vector<16x32xi1>, vector<16x32xf32>
    %c0_30 = arith.constant 0 : index
    %c0_31 = arith.constant 0 : index
    %59 = vector.load %arg9[%c0_30, %c0_31] : memref<16x32xf32, #tpu.memory_space<vmem>>, vector<16x32xf32>
    tpu.vector_store %arg9[%c0_30, %c0_31], %58 {strides = array<i32>} : memref<16x32xf32, #tpu.memory_space<vmem>>, vector<16x32xf32>,
    return
  }
  func.func @transform_0(%arg0: i32) -> (i32, i32) {
    %c0_i32 = arith.constant 0 : i32
    %c0_i32_0 = arith.constant 0 : i32
    %c0_i32_1 = arith.constant 0 : i32
    return %c0_i32, %c0_i32_0 : i32, i32
  }
  func.func @transform_1(%arg0: i32) -> (i32, i32) {
    %c0_i32 = arith.constant 0 : i32
    %c0_i32_0 = arith.constant 0 : i32
    %c0_i32_1 = arith.constant 0 : i32
    return %c0_i32, %c0_i32_0 : i32, i32
  }
  func.func @transform_2(%arg0: i32) -> (i32, i32) {
    %c0_i32 = arith.constant 0 : i32
    %c0_i32_0 = arith.constant 0 : i32
    %c0_i32_1 = arith.constant 0 : i32
    return %c0_i32, %c0_i32_0 : i32, i32
  }
  func.func @transform_3(%arg0: i32) -> (i32, i32) {
    %c0_i32 = arith.constant 0 : i32
    %c0_i32_0 = arith.constant 0 : i32
    %c0_i32_1 = arith.constant 0 : i32
    return %c0_i32, %c0_i32_0 : i32, i32
  }
  func.func @transform_4(%arg0: i32) -> (i32, i32) {
    %c0_i32 = arith.constant 0 : i32
    %c0_i32_0 = arith.constant 0 : i32
    %c0_i32_1 = arith.constant 0 : i32
    return %c0_i32, %c0_i32_0 : i32, i32
  }
  func.func @transform_5(%arg0: i32) -> (i32, i32) {
    %c0_i32 = arith.constant 0 : i32
    %c0_i32_0 = arith.constant 0 : i32
    %c0_i32_1 = arith.constant 0 : i32
    return %c0_i32, %c0_i32_0 : i32, i32
  }
  func.func @transform_6(%arg0: i32) -> (i32, i32) {
    %c0_i32 = arith.constant 0 : i32
    %c0_i32_0 = arith.constant 0 : i32
    %c0_i32_1 = arith.constant 0 : i32
    return %c0_i32, %c0_i32_0 : i32, i32
  }
  func.func @transform_7(%arg0: i32) -> (i32, i32) {
    %c0_i32 = arith.constant 0 : i32
    %c0_i32_0 = arith.constant 0 : i32
    %c0_i32_1 = arith.constant 0 : i32
    return %c0_i32, %c0_i32_0 : i32, i32
  }
  func.func @transform_8(%arg0: i32) -> (i32, i32) {
    %c0_i32 = arith.constant 0 : i32
    %c0_i32_0 = arith.constant 0 : i32
    %c0_i32_1 = arith.constant 0 : i32
    return %c0_i32, %c0_i32_0 : i32, i32
  }
}

</mosaic_0001>

<llo_original>
// kernel: tpu_custom_call.1
$region0: #{tpu_custom_call.1}
  #allocation0 [shape = 'u32[]', space=smem, size = 0x4, offset = 0x4, fixed_abs, tag = 'smem constant byte address 0x4 - core index']
  #allocation1 [shape = 'u32[144,128]{1,0:T(1,128)}', space=vmem, size = 0x12000, scoped, tag = 'internal scratch']
  %s0 = inlined_call_operand.vmem [shape: s32[32,1], index: 0, kind: input, shape index: {}]
  %s1 = inlined_call_operand.vmem [shape: s32[1,32], index: 1, kind: input, shape index: {}]
  %s2 = inlined_call_operand.vmem [shape: s32[32,1], index: 2, kind: input, shape index: {}]
  %s3 = inlined_call_operand.vmem [shape: f32[16,16], index: 3, kind: input, shape index: {}]
  %s4 = inlined_call_operand.vmem [shape: f32[16,32], index: 4, kind: input, shape index: {}]
  %s5 = inlined_call_operand.vmem [shape: f32[32,4], index: 5, kind: input, shape index: {}]
  %s6 = inlined_call_operand.vmem [shape: f32[32,4], index: 6, kind: input, shape index: {}]
  %s7 = inlined_call_operand.vmem [shape: f32[4,32], index: 7, kind: input, shape index: {}]
  %s8 = inlined_call_operand.hbm [shape: f32[16,32], index: 8, kind: output, shape index: {}]
  %s9 = sld [smem:[#allocation0]]
  $region42: #{tpu_custom_call.1} parent=0
    _
  %s11 = ssub.s32 1, %s9
  %s12 = scalar_select 0, %s11, %s9
  $region1: #{tpu_custom_call.1} parent=0
    #allocation2 [shape = 'u8[8192]{0}', space=vmem, size = 0x2000, scoped, tag = 'output window, operand 0, single buffered']
    #allocation3 [shape = 's32[1]{0}', space=sflag, size = 0x4, scoped, tag = 'scoped memory for tpu_custom_call.1']
    %13 = vsyncpa [#allocation3], 0
    // Predicated region
    $region2: #{tpu_custom_call.1} parent=1 // pred_check
      _
    $region3: #{tpu_custom_call.1} parent=1 // pred_check_branch
      %15 = sbr.rel (0) target = $region5
    $region4: #{tpu_custom_call.1} parent=1 // pred_region
      _
    $region5: #{tpu_custom_call.1} parent=1 // pred_fallthru
      _
    // Predicated region
    $region6: #{tpu_custom_call.1} parent=1 // pred_check
      _
    $region7: #{tpu_custom_call.1} parent=1 // pred_check_branch
      %17 = sbr.rel (0) target = $region9
    $region8: #{tpu_custom_call.1} parent=1 // pred_region
      _
    $region9: #{tpu_custom_call.1} parent=1 // pred_fallthru
      _
    // Predicated region
    $region10: #{tpu_custom_call.1} parent=1 // pred_check
      _
    $region11: #{tpu_custom_call.1} parent=1 // pred_check_branch
      %19 = sbr.rel (0) target = $region13
    $region12: #{tpu_custom_call.1} parent=1 // pred_region
      _
    $region13: #{tpu_custom_call.1} parent=1 // pred_fallthru
      _
    // Predicated region
    $region14: #{tpu_custom_call.1} parent=1 // pred_check
      _
    $region15: #{tpu_custom_call.1} parent=1 // pred_check_branch
      %21 = sbr.rel (0) target = $region17
    $region16: #{tpu_custom_call.1} parent=1 // pred_region
      _
    $region17: #{tpu_custom_call.1} parent=1 // pred_fallthru
      _
    // Predicated region
    $region18: #{tpu_custom_call.1} parent=1 // pred_check
      _
    $region19: #{tpu_custom_call.1} parent=1 // pred_check_branch
      %23 = sbr.rel (0) target = $region21
    $region20: #{tpu_custom_call.1} parent=1 // pred_region
      _
    $region21: #{tpu_custom_call.1} parent=1 // pred_fallthru
      _
    // Predicated region
    $region22: #{tpu_custom_call.1} parent=1 // pred_check
      _
    $region23: #{tpu_custom_call.1} parent=1 // pred_check_branch
      %25 = sbr.rel (0) target = $region25
    $region24: #{tpu_custom_call.1} parent=1 // pred_region
      _
    $region25: #{tpu_custom_call.1} parent=1 // pred_fallthru
      _
    // Predicated region
    $region26: #{tpu_custom_call.1} parent=1 // pred_check
      _
    $region27: #{tpu_custom_call.1} parent=1 // pred_check_branch
      %27 = sbr.rel (0) target = $region29
    $region28: #{tpu_custom_call.1} parent=1 // pred_region
      _
    $region29: #{tpu_custom_call.1} parent=1 // pred_fallthru
      _
    // Predicated region
    $region30: #{tpu_custom_call.1} parent=1 // pred_check
      _
    $region31: #{tpu_custom_call.1} parent=1 // pred_check_branch
      %29 = sbr.rel (0) target = $region33
    $region32: #{tpu_custom_call.1} parent=1 // pred_region
      _
    $region33: #{tpu_custom_call.1} parent=1 // pred_fallthru
      _
    %v30 = vld [vmem:[%s3] sm:$0xff]
    %v31 = vld [vmem:[%s3 + $0x8] sm:$0xff]
    %v32 = vld [vmem:[%s4] sm:$0xff]
    %v33 = vld [vmem:[%s4 + $0x8] sm:$0xff]
    %vm34 = vcmask 130048
    %v36 = vsel %vm34, %v30, 0
    %v39 = vsel %vm34, %v31, 0
    %41 = vmatprep.subr.mxu0 0.0
    %42 = vmatpush1.msra.mxu0 %v32
    %43 = vmatprep.subr.mxu0 0.0
    %44 = vmatpush1.msra.mxu0 %v33
    %45 = vmatprep.subr.mxu0 0.0
    %46 = vmatpush1.msra.mxu0 0.0
    %47 = vmatprep.subr.mxu0 0.0
    %48 = vmatpush1.msra.mxu0 0.0
    %49 = vmatprep.subr.mxu0 0.0
    %50 = vmatpush1.msra.mxu0 0.0
    %51 = vmatprep.subr.mxu0 0.0
    %52 = vmatpush1.msra.mxu0 0.0
    %53 = vmatprep.subr.mxu0 0.0
    %54 = vmatpush1.msra.mxu0 0.0
    %55 = vmatprep.subr.mxu0 0.0
    %56 = vmatpush1.msra.mxu0 0.0
    %57 = vmatprep.subr.mxu0 0.0
    %58 = vmatpush1.msra.mxu0 0.0
    %59 = vmatprep.subr.mxu0 0.0
    %60 = vmatpush1.msra.mxu0 0.0
    %61 = vmatprep.subr.mxu0 0.0
    %62 = vmatpush1.msra.mxu0 0.0
    %63 = vmatprep.subr.mxu0 0.0
    %64 = vmatpush1.msra.mxu0 0.0
    %65 = vmatprep.subr.mxu0 0.0
    %66 = vmatpush1.msra.mxu0 0.0
    %67 = vmatprep.subr.mxu0 0.0
    %68 = vmatpush1.msra.mxu0 0.0
    %69 = vmatprep.subr.mxu0 0.0
    %70 = vmatpush1.msra.mxu0 0.0
    %71 = vmatprep.subr.mxu0 0.0
    %72 = vmatpush1.msra.mxu0 0.0
    %73 = vmatprep.subr.mxu0 0.0
    %74 = vmatpush1.msra.mxu0 0.0
    %75 = vmatprep.subr.mxu0 0.0
    %76 = vmatpush1.msra.mxu0 0.0
    %77 = vmatprep.subr.mxu0 0.0
    %78 = vmatpush1.msra.mxu0 0.0
    %79 = vmatprep.subr.mxu0 0.0
    %80 = vmatpush1.msra.mxu0 0.0
    %81 = vmatprep.subr.mxu0 0.0
    %82 = vmatpush1.msra.mxu0 0.0
    %83 = vmatprep.subr.mxu0 0.0
    %84 = vmatpush1.msra.mxu0 0.0
    %85 = vmatprep.subr.mxu0 0.0
    %86 = vmatpush1.msra.mxu0 0.0
    %87 = vmatprep.subr.mxu0 0.0
    %88 = vmatpush1.msra.mxu0 0.0
    %89 = vmatprep.subr.mxu0 0.0
    %90 = vmatpush1.msra.mxu0 0.0
    %91 = vmatprep.subr.mxu0 0.0
    %92 = vmatpush1.msra.mxu0 0.0
    %93 = vmatprep.subr.mxu0 0.0
    %94 = vmatpush1.msra.mxu0 0.0
    %95 = vmatprep.subr.mxu0 0.0
    %96 = vmatpush1.msra.mxu0 0.0
    %97 = vmatprep.subr.mxu0 0.0
    %98 = vmatpush1.msra.mxu0 0.0
    %99 = vmatprep.subr.mxu0 0.0
    %100 = vmatpush1.msra.mxu0 0.0
    %101 = vmatprep.subr.mxu0 0.0
    %102 = vmatpush1.msra.mxu0 0.0
    %103 = vmatprep.subr.mxu0 0.0
    %104 = vmatpush1.msra.mxu0 0.0
    %105 = vmatprep.mubr.f32.mxu0 0.0
    %106 = vmatmul.mubr.f32.gmra.mrb[0].mxu0 %v36
    %v107 = vpop.f32.mrb[0].mxu0
    %v108 = vadd.f32 0.0, %v107
    %v109 = vpop.f32.mrb[0].mxu0
    %110 = vmatprep.mubr.f32.mxu0 0.0
    %111 = vmatmul.mubr.f32.gmra.mrb[0].mxu0 %v39
    %v112 = vpop.f32.mrb[0].mxu0
    %v113 = vadd.f32 0.0, %v112
    %v114 = vpop.f32.mrb[0].mxu0
    %115 = vdwg.mxu0
    %v116 = vld [vmem:[%s5] sm:$0xff]
    %v117 = vld [vmem:[%s5 + $0x8] sm:$0xff]
    %v118 = vld [vmem:[%s5 + $0x10] sm:$0xff]
    %v119 = vld [vmem:[%s5 + $0x18] sm:$0xff]
    %vm120 = vcmask 261120
    %v122 = vsel %vm120, %v108, 0
    %v125 = vsel %vm120, %v113, 0
    %127 = vmatprep.subr.mxu0 0.0
    %128 = vmatpush1.msra.mxu0 %v116
    %129 = vmatprep.subr.mxu0 0.0
    %130 = vmatpush1.msra.mxu0 %v117
    %131 = vmatprep.subr.mxu0 0.0
    %132 = vmatpush1.msra.mxu0 %v118
    %133 = vmatprep.subr.mxu0 0.0
    %134 = vmatpush1.msra.mxu0 %v119
    %135 = vmatprep.subr.mxu0 0.0
    %136 = vmatpush1.msra.mxu0 0.0
    %137 = vmatprep.subr.mxu0 0.0
    %138 = vmatpush1.msra.mxu0 0.0
    %139 = vmatprep.subr.mxu0 0.0
    %140 = vmatpush1.msra.mxu0 0.0
    %141 = vmatprep.subr.mxu0 0.0
    %142 = vmatpush1.msra.mxu0 0.0
    %143 = vmatprep.subr.mxu0 0.0
    %144 = vmatpush1.msra.mxu0 0.0
    %145 = vmatprep.subr.mxu0 0.0
    %146 = vmatpush1.msra.mxu0 0.0
    %147 = vmatprep.subr.mxu0 0.0
    %148 = vmatpush1.msra.mxu0 0.0
    %149 = vmatprep.subr.mxu0 0.0
    %150 = vmatpush1.msra.mxu0 0.0
    %151 = vmatprep.subr.mxu0 0.0
    %152 = vmatpush1.msra.mxu0 0.0
    %153 = vmatprep.subr.mxu0 0.0
    %154 = vmatpush1.msra.mxu0 0.0
    %155 = vmatprep.subr.mxu0 0.0
    %156 = vmatpush1.msra.mxu0 0.0
    %157 = vmatprep.subr.mxu0 0.0
    %158 = vmatpush1.msra.mxu0 0.0
    %159 = vmatprep.subr.mxu0 0.0
    %160 = vmatpush1.msra.mxu0 0.0
    %161 = vmatprep.subr.mxu0 0.0
    %162 = vmatpush1.msra.mxu0 0.0
    %163 = vmatprep.subr.mxu0 0.0
    %164 = vmatpush1.msra.mxu0 0.0
    %165 = vmatprep.subr.mxu0 0.0
    %166 = vmatpush1.msra.mxu0 0.0
    %167 = vmatprep.subr.mxu0 0.0
    %168 = vmatpush1.msra.mxu0 0.0
    %169 = vmatprep.subr.mxu0 0.0
    %170 = vmatpush1.msra.mxu0 0.0
    %171 = vmatprep.subr.mxu0 0.0
    %172 = vmatpush1.msra.mxu0 0.0
    %173 = vmatprep.subr.mxu0 0.0
    %174 = vmatpush1.msra.mxu0 0.0
    %175 = vmatprep.subr.mxu0 0.0
    %176 = vmatpush1.msra.mxu0 0.0
    %177 = vmatprep.subr.mxu0 0.0
    %178 = vmatpush1.msra.mxu0 0.0
    %179 = vmatprep.subr.mxu0 0.0
    %180 = vmatpush1.msra.mxu0 0.0
    %181 = vmatprep.subr.mxu0 0.0
    %182 = vmatpush1.msra.mxu0 0.0
    %183 = vmatprep.subr.mxu0 0.0
    %184 = vmatpush1.msra.mxu0 0.0
    %185 = vmatprep.subr.mxu0 0.0
    %186 = vmatpush1.msra.mxu0 0.0
    %187 = vmatprep.subr.mxu0 0.0
    %188 = vmatpush1.msra.mxu0 0.0
    %189 = vmatprep.subr.mxu0 0.0
    %190 = vmatpush1.msra.mxu0 0.0
    %191 = vmatprep.mubr.f32.mxu0 0.0
    %192 = vmatmul.mubr.f32.gmra.mrb[0].mxu0 %v122
    %v193 = vpop.f32.mrb[0].mxu0
    %v194 = vadd.f32 0.0, %v193
    %v195 = vpop.f32.mrb[0].mxu0
    %196 = vmatprep.mubr.f32.mxu0 0.0
    %197 = vmatmul.mubr.f32.gmra.mrb[0].mxu0 %v125
    %v198 = vpop.f32.mrb[0].mxu0
    %v199 = vadd.f32 0.0, %v198
    %v200 = vpop.f32.mrb[0].mxu0
    %201 = vdwg.mxu0
    %v202 = vld [vmem:[%s6] sm:$0xff]
    %v203 = vld [vmem:[%s6 + $0x8] sm:$0xff]
    %v204 = vld [vmem:[%s6 + $0x10] sm:$0xff]
    %v205 = vld [vmem:[%s6 + $0x18] sm:$0xff]
    %206 = vmatprep.subr.mxu0 0.0
    %207 = vmatpush1.msra.mxu0 %v202
    %208 = vmatprep.subr.mxu0 0.0
    %209 = vmatpush1.msra.mxu0 %v203
    %210 = vmatprep.subr.mxu0 0.0
    %211 = vmatpush1.msra.mxu0 %v204
    %212 = vmatprep.subr.mxu0 0.0
    %213 = vmatpush1.msra.mxu0 %v205
    %214 = vmatprep.subr.mxu0 0.0
    %215 = vmatpush1.msra.mxu0 0.0
    %216 = vmatprep.subr.mxu0 0.0
    %217 = vmatpush1.msra.mxu0 0.0
    %218 = vmatprep.subr.mxu0 0.0
    %219 = vmatpush1.msra.mxu0 0.0
    %220 = vmatprep.subr.mxu0 0.0
    %221 = vmatpush1.msra.mxu0 0.0
    %222 = vmatprep.subr.mxu0 0.0
    %223 = vmatpush1.msra.mxu0 0.0
    %224 = vmatprep.subr.mxu0 0.0
    %225 = vmatpush1.msra.mxu0 0.0
    %226 = vmatprep.subr.mxu0 0.0
    %227 = vmatpush1.msra.mxu0 0.0
    %228 = vmatprep.subr.mxu0 0.0
    %229 = vmatpush1.msra.mxu0 0.0
    %230 = vmatprep.subr.mxu0 0.0
    %231 = vmatpush1.msra.mxu0 0.0
    %232 = vmatprep.subr.mxu0 0.0
    %233 = vmatpush1.msra.mxu0 0.0
    %234 = vmatprep.subr.mxu0 0.0
    %235 = vmatpush1.msra.mxu0 0.0
    %236 = vmatprep.subr.mxu0 0.0
    %237 = vmatpush1.msra.mxu0 0.0
    %238 = vmatprep.subr.mxu0 0.0
    %239 = vmatpush1.msra.mxu0 0.0
    %240 = vmatprep.subr.mxu0 0.0
    %241 = vmatpush1.msra.mxu0 0.0
    %242 = vmatprep.subr.mxu0 0.0
    %243 = vmatpush1.msra.mxu0 0.0
    %244 = vmatprep.subr.mxu0 0.0
    %245 = vmatpush1.msra.mxu0 0.0
    %246 = vmatprep.subr.mxu0 0.0
    %247 = vmatpush1.msra.mxu0 0.0
    %248 = vmatprep.subr.mxu0 0.0
    %249 = vmatpush1.msra.mxu0 0.0
    %250 = vmatprep.subr.mxu0 0.0
    %251 = vmatpush1.msra.mxu0 0.0
    %252 = vmatprep.subr.mxu0 0.0
    %253 = vmatpush1.msra.mxu0 0.0
    %254 = vmatprep.subr.mxu0 0.0
    %255 = vmatpush1.msra.mxu0 0.0
    %256 = vmatprep.subr.mxu0 0.0
    %257 = vmatpush1.msra.mxu0 0.0
    %258 = vmatprep.subr.mxu0 0.0
    %259 = vmatpush1.msra.mxu0 0.0
    %260 = vmatprep.subr.mxu0 0.0
    %261 = vmatpush1.msra.mxu0 0.0
    %262 = vmatprep.subr.mxu0 0.0
    %263 = vmatpush1.msra.mxu0 0.0
    %264 = vmatprep.subr.mxu0 0.0
    %265 = vmatpush1.msra.mxu0 0.0
    %266 = vmatprep.subr.mxu0 0.0
    %267 = vmatpush1.msra.mxu0 0.0
    %268 = vmatprep.subr.mxu0 0.0
    %269 = vmatpush1.msra.mxu0 0.0
    %270 = vmatprep.mubr.f32.mxu0 0.0
    %271 = vmatmul.mubr.f32.gmra.mrb[0].mxu0 %v122
    %v272 = vpop.f32.mrb[0].mxu0
    %v273 = vadd.f32 0.0, %v272
    %v274 = vpop.f32.mrb[0].mxu0
    %275 = vmatprep.mubr.f32.mxu0 0.0
    %276 = vmatmul.mubr.f32.gmra.mrb[0].mxu0 %v125
    %v277 = vpop.f32.mrb[0].mxu0
    %v278 = vadd.f32 0.0, %v277
    %v279 = vpop.f32.mrb[0].mxu0
    %280 = vdwg.mxu0
    %v281 = vlaneseq
    %v282 = vand.u32 %v281, 127
    %v283 = vld [vmem:[%s0] sm:$0xff]
    %v284 = vld [vmem:[%s0 + $0x8] sm:$0xff]
    %v285 = vld [vmem:[%s0 + $0x10] sm:$0xff]
    %v286 = vld [vmem:[%s0 + $0x18] sm:$0xff]
    %287 = vset.pattern.permute.xlu0 0
    %288 = vperm.xlu0 %287, %v283
    %v289 = vpop.permute.xlu0 %288
    %290 = vset.pattern.permute.xlu0 0
    %291 = vperm.xlu0 %290, %v284
    %v292 = vpop.permute.xlu0 %291
    %293 = vset.pattern.permute.xlu0 0
    %294 = vperm.xlu0 %293, %v285
    %v295 = vpop.permute.xlu0 %294
    %296 = vset.pattern.permute.xlu0 0
    %297 = vperm.xlu0 %296, %v286
    %v298 = vpop.permute.xlu0 %297
    %vm299 = vcmp.eq.s32.totalorder %v289, %v282
    %vm300 = vcmp.eq.s32.totalorder %v292, %v282
    %vm301 = vcmp.eq.s32.totalorder %v295, %v282
    %vm302 = vcmp.eq.s32.totalorder %v298, %v282
    %v303 = vsel %vm299, 1, 0
    %v304 = vsel %vm300, 1, 0
    %v305 = vsel %vm301, 1, 0
    %v306 = vsel %vm302, 1, 0
    %v307 = vcvt.s32.f32 %v303
    %v308 = vcvt.s32.f32 %v304
    %v309 = vcvt.s32.f32 %v305
    %v310 = vcvt.s32.f32 %v306
    %v311 = vld [vmem:[%s2] sm:$0xff]
    %v312 = vld [vmem:[%s2 + $0x8] sm:$0xff]
    %v313 = vld [vmem:[%s2 + $0x10] sm:$0xff]
    %v314 = vld [vmem:[%s2 + $0x18] sm:$0xff]
    %315 = vset.pattern.permute.xlu0 0
    %316 = vperm.xlu0 %315, %v311
    %v317 = vpop.permute.xlu0 %316
    %318 = vset.pattern.permute.xlu0 0
    %319 = vperm.xlu0 %318, %v312
    %v320 = vpop.permute.xlu0 %319
    %321 = vset.pattern.permute.xlu0 0
    %322 = vperm.xlu0 %321, %v313
    %v323 = vpop.permute.xlu0 %322
    %324 = vset.pattern.permute.xlu0 0
    %325 = vperm.xlu0 %324, %v314
    %v326 = vpop.permute.xlu0 %325
    %vm327 = vcmp.eq.s32.totalorder %v317, %v282
    %vm328 = vcmp.eq.s32.totalorder %v320, %v282
    %vm329 = vcmp.eq.s32.totalorder %v323, %v282
    %vm330 = vcmp.eq.s32.totalorder %v326, %v282
    %v331 = vsel %vm327, 1, 0
    %v332 = vsel %vm328, 1, 0
    %v333 = vsel %vm329, 1, 0
    %v334 = vsel %vm330, 1, 0
    %v335 = vcvt.s32.f32 %v331
    %v336 = vcvt.s32.f32 %v332
    %v337 = vcvt.s32.f32 %v333
    %v338 = vcvt.s32.f32 %v334
    %v339 = vlaneseq
    %v340 = vshrl.u32 %v339, 7
    %v341 = vadd.s32 %v340, 8
    %v342 = vld [vmem:[%s1] sm:$0x1]
    %v343 = vlaneseq
    %v344 = vshrl.u32 %v343, 7
    %v345 = vsub.s32 0, %v344
    %v346 = vrot.slane %v342, %v345
    %vm347 = vcmp.eq.s32.totalorder %v346, %v340
    %vm348 = vcmp.eq.s32.totalorder %v346, %v341
    %v349 = vsel %vm347, 1, 0
    %v350 = vsel %vm348, 1, 0
    %v351 = vcvt.s32.f32 %v349
    %v352 = vcvt.s32.f32 %v350
    %v354 = vsel %vm34, %v335, 0
    %v357 = vsel %vm34, %v336, 0
    %v360 = vsel %vm34, %v337, 0
    %v363 = vsel %vm34, %v338, 0
    %365 = vmatprep.subr.mxu0 0.0
    %366 = vmatpush1.msra.mxu0 %v273
    %367 = vmatprep.subr.mxu0 0.0
    %368 = vmatpush1.msra.mxu0 %v278
    %369 = vmatprep.subr.mxu0 0.0
    %370 = vmatpush1.msra.mxu0 0.0
    %371 = vmatprep.subr.mxu0 0.0
    %372 = vmatpush1.msra.mxu0 0.0
    %373 = vmatprep.subr.mxu0 0.0
    %374 = vmatpush1.msra.mxu0 0.0
    %375 = vmatprep.subr.mxu0 0.0
    %376 = vmatpush1.msra.mxu0 0.0
    %377 = vmatprep.subr.mxu0 0.0
    %378 = vmatpush1.msra.mxu0 0.0
    %379 = vmatprep.subr.mxu0 0.0
    %380 = vmatpush1.msra.mxu0 0.0
    %381 = vmatprep.subr.mxu0 0.0
    %382 = vmatpush1.msra.mxu0 0.0
    %383 = vmatprep.subr.mxu0 0.0
    %384 = vmatpush1.msra.mxu0 0.0
    %385 = vmatprep.subr.mxu0 0.0
    %386 = vmatpush1.msra.mxu0 0.0
    %387 = vmatprep.subr.mxu0 0.0
    %388 = vmatpush1.msra.mxu0 0.0
    %389 = vmatprep.subr.mxu0 0.0
    %390 = vmatpush1.msra.mxu0 0.0
    %391 = vmatprep.subr.mxu0 0.0
    %392 = vmatpush1.msra.mxu0 0.0
    %393 = vmatprep.subr.mxu0 0.0
    %394 = vmatpush1.msra.mxu0 0.0
    %395 = vmatprep.subr.mxu0 0.0
    %396 = vmatpush1.msra.mxu0 0.0
    %397 = vmatprep.subr.mxu0 0.0
    %398 = vmatpush1.msra.mxu0 0.0
    %399 = vmatprep.subr.mxu0 0.0
    %400 = vmatpush1.msra.mxu0 0.0
    %401 = vmatprep.subr.mxu0 0.0
    %402 = vmatpush1.msra.mxu0 0.0
    %403 = vmatprep.subr.mxu0 0.0
    %404 = vmatpush1.msra.mxu0 0.0
    %405 = vmatprep.subr.mxu0 0.0
    %406 = vmatpush1.msra.mxu0 0.0
    %407 = vmatprep.subr.mxu0 0.0
    %408 = vmatpush1.msra.mxu0 0.0
    %409 = vmatprep.subr.mxu0 0.0
    %410 = vmatpush1.msra.mxu0 0.0
    %411 = vmatprep.subr.mxu0 0.0
    %412 = vmatpush1.msra.mxu0 0.0
    %413 = vmatprep.subr.mxu0 0.0
    %414 = vmatpush1.msra.mxu0 0.0
    %415 = vmatprep.subr.mxu0 0.0
    %416 = vmatpush1.msra.mxu0 0.0
    %417 = vmatprep.subr.mxu0 0.0
    %418 = vmatpush1.msra.mxu0 0.0
    %419 = vmatprep.subr.mxu0 0.0
    %420 = vmatpush1.msra.mxu0 0.0
    %421 = vmatprep.subr.mxu0 0.0
    %422 = vmatpush1.msra.mxu0 0.0
    %423 = vmatprep.subr.mxu0 0.0
    %424 = vmatpush1.msra.mxu0 0.0
    %425 = vmatprep.subr.mxu0 0.0
    %426 = vmatpush1.msra.mxu0 0.0
    %427 = vmatprep.subr.mxu0 0.0
    %428 = vmatpush1.msra.mxu0 0.0
    %429 = vmatprep.mubr.f32.mxu0 0.0
    %430 = vmatmul.mubr.f32.gmra.mrb[0].mxu0 %v354
    %v431 = vpop.f32.mrb[0].mxu0
    %v432 = vadd.f32 0.0, %v431
    %v433 = vpop.f32.mrb[0].mxu0
    %434 = vmatprep.mubr.f32.mxu0 0.0
    %435 = vmatmul.mubr.f32.gmra.mrb[0].mxu0 %v357
    %v436 = vpop.f32.mrb[0].mxu0
    %v437 = vadd.f32 0.0, %v436
    %v438 = vpop.f32.mrb[0].mxu0
    %439 = vmatprep.mubr.f32.mxu0 0.0
    %440 = vmatmul.mubr.f32.gmra.mrb[0].mxu0 %v360
    %v441 = vpop.f32.mrb[0].mxu0
    %v442 = vadd.f32 0.0, %v441
    %v443 = vpop.f32.mrb[0].mxu0
    %444 = vmatprep.mubr.f32.mxu0 0.0
    %445 = vmatmul.mubr.f32.gmra.mrb[0].mxu0 %v363
    %v446 = vpop.f32.mrb[0].mxu0
    %v447 = vadd.f32 0.0, %v446
    %v448 = vpop.f32.mrb[0].mxu0
    %449 = vdwg.mxu0
    %v451 = vsel %vm34, %v307, 0
    %v454 = vsel %vm34, %v308, 0
    %v457 = vsel %vm34, %v309, 0
    %v460 = vsel %vm34, %v310, 0
    %462 = vmatprep.subr.mxu0 0.0
    %463 = vmatpush1.msra.mxu0 %v194
    %464 = vmatprep.subr.mxu0 0.0
    %465 = vmatpush1.msra.mxu0 %v199
    %466 = vmatprep.subr.mxu0 0.0
    %467 = vmatpush1.msra.mxu0 0.0
    %468 = vmatprep.subr.mxu0 0.0
    %469 = vmatpush1.msra.mxu0 0.0
    %470 = vmatprep.subr.mxu0 0.0
    %471 = vmatpush1.msra.mxu0 0.0
    %472 = vmatprep.subr.mxu0 0.0
    %473 = vmatpush1.msra.mxu0 0.0
    %474 = vmatprep.subr.mxu0 0.0
    %475 = vmatpush1.msra.mxu0 0.0
    %476 = vmatprep.subr.mxu0 0.0
    %477 = vmatpush1.msra.mxu0 0.0
    %478 = vmatprep.subr.mxu0 0.0
    %479 = vmatpush1.msra.mxu0 0.0
    %480 = vmatprep.subr.mxu0 0.0
    %481 = vmatpush1.msra.mxu0 0.0
    %482 = vmatprep.subr.mxu0 0.0
    %483 = vmatpush1.msra.mxu0 0.0
    %484 = vmatprep.subr.mxu0 0.0
    %485 = vmatpush1.msra.mxu0 0.0
    %486 = vmatprep.subr.mxu0 0.0
    %487 = vmatpush1.msra.mxu0 0.0
    %488 = vmatprep.subr.mxu0 0.0
    %489 = vmatpush1.msra.mxu0 0.0
    %490 = vmatprep.subr.mxu0 0.0
    %491 = vmatpush1.msra.mxu0 0.0
    %492 = vmatprep.subr.mxu0 0.0
    %493 = vmatpush1.msra.mxu0 0.0
    %494 = vmatprep.subr.mxu0 0.0
    %495 = vmatpush1.msra.mxu0 0.0
    %496 = vmatprep.subr.mxu0 0.0
    %497 = vmatpush1.msra.mxu0 0.0
    %498 = vmatprep.subr.mxu0 0.0
    %499 = vmatpush1.msra.mxu0 0.0
    %500 = vmatprep.subr.mxu0 0.0
    %501 = vmatpush1.msra.mxu0 0.0
    %502 = vmatprep.subr.mxu0 0.0
    %503 = vmatpush1.msra.mxu0 0.0
    %504 = vmatprep.subr.mxu0 0.0
    %505 = vmatpush1.msra.mxu0 0.0
    %506 = vmatprep.subr.mxu0 0.0
    %507 = vmatpush1.msra.mxu0 0.0
    %508 = vmatprep.subr.mxu0 0.0
    %509 = vmatpush1.msra.mxu0 0.0
    %510 = vmatprep.subr.mxu0 0.0
    %511 = vmatpush1.msra.mxu0 0.0
    %512 = vmatprep.subr.mxu0 0.0
    %513 = vmatpush1.msra.mxu0 0.0
    %514 = vmatprep.subr.mxu0 0.0
    %515 = vmatpush1.msra.mxu0 0.0
    %516 = vmatprep.subr.mxu0 0.0
    %517 = vmatpush1.msra.mxu0 0.0
    %518 = vmatprep.subr.mxu0 0.0
    %519 = vmatpush1.msra.mxu0 0.0
    %520 = vmatprep.subr.mxu0 0.0
    %521 = vmatpush1.msra.mxu0 0.0
    %522 = vmatprep.subr.mxu0 0.0
    %523 = vmatpush1.msra.mxu0 0.0
    %524 = vmatprep.subr.mxu0 0.0
    %525 = vmatpush1.msra.mxu0 0.0
    %526 = vmatprep.mubr.f32.mxu0 0.0
    %527 = vmatmul.mubr.f32.gmra.mrb[0].mxu0 %v451
    %v528 = vpop.f32.mrb[0].mxu0
    %v529 = vadd.f32 %v432, %v528
    %v530 = vpop.f32.mrb[0].mxu0
    %531 = vmatprep.mubr.f32.mxu0 0.0
    %532 = vmatmul.mubr.f32.gmra.mrb[0].mxu0 %v454
    %v533 = vpop.f32.mrb[0].mxu0
    %v534 = vadd.f32 %v437, %v533
    %v535 = vpop.f32.mrb[0].mxu0
    %536 = vmatprep.mubr.f32.mxu0 0.0
    %537 = vmatmul.mubr.f32.gmra.mrb[0].mxu0 %v457
    %v538 = vpop.f32.mrb[0].mxu0
    %v539 = vadd.f32 %v442, %v538
    %v540 = vpop.f32.mrb[0].mxu0
    %541 = vmatprep.mubr.f32.mxu0 0.0
    %542 = vmatmul.mubr.f32.gmra.mrb[0].mxu0 %v460
    %v543 = vpop.f32.mrb[0].mxu0
    %v544 = vadd.f32 %v447, %v543
    %v545 = vpop.f32.mrb[0].mxu0
    %546 = vdwg.mxu0
    %vm547 = vcmp.gt.f32.partialorder %v529, 0.0
    %vm548 = vcmp.gt.f32.partialorder %v534, 0.0
    %vm549 = vcmp.gt.f32.partialorder %v539, 0.0
    %vm550 = vcmp.gt.f32.partialorder %v544, 0.0
    %v551 = vmul.f32 %v529, 0.2
    %v552 = vmul.f32 %v534, 0.2
    %v553 = vmul.f32 %v539, 0.2
    %v554 = vmul.f32 %v544, 0.2
    %v555 = vsel %vm547, %v529, %v551
    %v556 = vsel %vm548, %v534, %v552
    %v557 = vsel %vm549, %v539, %v553
    %v558 = vsel %vm550, %v544, %v554
    %vm559 = vcmask 31744
    %v560 = vsel %vm559, %v555, -inf
    %v561 = vsel %vm559, %v556, -inf
    %v562 = vsel %vm559, %v557, -inf
    %v563 = vsel %vm559, %v558, -inf
    %v564 = vmax.f32 %v560, %v561
    %v565 = vmax.f32 %v562, %v563
    %v566 = vmax.f32 %v564, %v565
    %v567 = vrot.slane %v566, 4
    %v568 = vmax.f32 %v566, %v567
    %v569 = vrot.slane %v568, 2
    %v570 = vmax.f32 %v568, %v569
    %v571 = vrot.slane %v570, 1
    %v572 = vmax.f32 %v570, %v571
    %v573 = vsub.f32 %v555, %v572
    %v574 = vsub.f32 %v556, %v572
    %v575 = vsub.f32 %v557, %v572
    %v576 = vsub.f32 %v558, %v572
    %v577 = vmul.f32 %v573, 1.442695
    %v578 = vpow.pop %v577
    %v579 = vmul.f32 %v574, 1.442695
    %v580 = vpow.pop %v579
    %v581 = vmul.f32 %v575, 1.442695
    %v582 = vpow.pop %v581
    %v583 = vmul.f32 %v576, 1.442695
    %v584 = vpow.pop %v583
    %v585 = vsel %vm559, %v578, 0.0
    %v586 = vsel %vm559, %v580, 0.0
    %v587 = vadd.f32 %v585, %v586
    %v588 = vsel %vm559, %v582, 0.0
    %v589 = vadd.f32 %v587, %v588
    %v590 = vsel %vm559, %v584, 0.0
    %v591 = vadd.f32 %v589, %v590
    %v592 = vrot.slane %v591, 4
    %v593 = vadd.f32 %v591, %v592
    %v594 = vrot.slane %v593, 2
    %v595 = vadd.f32 %v593, %v594
    %v596 = vrot.slane %v595, 1
    %v597 = vadd.f32 %v595, %v596
    %v598 = vrcp.pop %v597
    %v599 = vmul.f32 %v597, %v598
    %v600 = vsub.f32 2.0, %v599
    %v601 = vmul.f32 %v598, %v600
    %v602 = vmul.f32 %v578, %v601
    %v603 = vmul.f32 %v580, %v601
    %v604 = vmul.f32 %v582, %v601
    %v605 = vmul.f32 %v584, %v601
    %v606 = vld [vmem:[%s7] sm:$0xf]
    %v608 = vsel %vm559, %v602, 0
    %v611 = vsel %vm559, %v603, 0
    %v614 = vsel %vm559, %v604, 0
    %v617 = vsel %vm559, %v605, 0
    %vm619 = vcmask 1043456
    %v621 = vsel %vm619, %v606, 0
    %623 = vmatprep.subr.mxu0 0.0
    %624 = vmatpush1.msra.mxu0 %v621
    %625 = vmatprep.subr.mxu0 0.0
    %626 = vmatpush1.msra.mxu0 0.0
    %627 = vmatprep.subr.mxu0 0.0
    %628 = vmatpush1.msra.mxu0 0.0
    %629 = vmatprep.subr.mxu0 0.0
    %630 = vmatpush1.msra.mxu0 0.0
    %631 = vmatprep.subr.mxu0 0.0
    %632 = vmatpush1.msra.mxu0 0.0
    %633 = vmatprep.subr.mxu0 0.0
    %634 = vmatpush1.msra.mxu0 0.0
    %635 = vmatprep.subr.mxu0 0.0
    %636 = vmatpush1.msra.mxu0 0.0
    %637 = vmatprep.subr.mxu0 0.0
    %638 = vmatpush1.msra.mxu0 0.0
    %639 = vmatprep.subr.mxu0 0.0
    %640 = vmatpush1.msra.mxu0 0.0
    %641 = vmatprep.subr.mxu0 0.0
    %642 = vmatpush1.msra.mxu0 0.0
    %643 = vmatprep.subr.mxu0 0.0
    %644 = vmatpush1.msra.mxu0 0.0
    %645 = vmatprep.subr.mxu0 0.0
    %646 = vmatpush1.msra.mxu0 0.0
    %647 = vmatprep.subr.mxu0 0.0
    %648 = vmatpush1.msra.mxu0 0.0
    %649 = vmatprep.subr.mxu0 0.0
    %650 = vmatpush1.msra.mxu0 0.0
    %651 = vmatprep.subr.mxu0 0.0
    %652 = vmatpush1.msra.mxu0 0.0
    %653 = vmatprep.subr.mxu0 0.0
    %654 = vmatpush1.msra.mxu0 0.0
    %655 = vmatprep.subr.mxu0 0.0
    %656 = vmatpush1.msra.mxu0 0.0
    %657 = vmatprep.subr.mxu0 0.0
    %658 = vmatpush1.msra.mxu0 0.0
    %659 = vmatprep.subr.mxu0 0.0
    %660 = vmatpush1.msra.mxu0 0.0
    %661 = vmatprep.subr.mxu0 0.0
    %662 = vmatpush1.msra.mxu0 0.0
    %663 = vmatprep.subr.mxu0 0.0
    %664 = vmatpush1.msra.mxu0 0.0
    %665 = vmatprep.subr.mxu0 0.0
    %666 = vmatpush1.msra.mxu0 0.0
    %667 = vmatprep.subr.mxu0 0.0
    %668 = vmatpush1.msra.mxu0 0.0
    %669 = vmatprep.subr.mxu0 0.0
    %670 = vmatpush1.msra.mxu0 0.0
    %671 = vmatprep.subr.mxu0 0.0
    %672 = vmatpush1.msra.mxu0 0.0
    %673 = vmatprep.subr.mxu0 0.0
    %674 = vmatpush1.msra.mxu0 0.0
    %675 = vmatprep.subr.mxu0 0.0
    %676 = vmatpush1.msra.mxu0 0.0
    %677 = vmatprep.subr.mxu0 0.0
    %678 = vmatpush1.msra.mxu0 0.0
    %679 = vmatprep.subr.mxu0 0.0
    %680 = vmatpush1.msra.mxu0 0.0
    %681 = vmatprep.subr.mxu0 0.0
    %682 = vmatpush1.msra.mxu0 0.0
    %683 = vmatprep.subr.mxu0 0.0
    %684 = vmatpush1.msra.mxu0 0.0
    %685 = vmatprep.subr.mxu0 0.0
    %686 = vmatpush1.msra.mxu0 0.0
    %687 = vmatprep.mubr.f32.mxu0 0.0
    %688 = vmatmul.mubr.f32.gmra.mrb[0].mxu0 %v608
    %v689 = vpop.f32.mrb[0].mxu0
    %v690 = vadd.f32 0.0, %v689
    %v691 = vpop.f32.mrb[0].mxu0
    %692 = vmatprep.mubr.f32.mxu0 0.0
    %693 = vmatmul.mubr.f32.gmra.mrb[0].mxu0 %v611
    %v694 = vpop.f32.mrb[0].mxu0
    %v695 = vadd.f32 0.0, %v694
    %v696 = vpop.f32.mrb[0].mxu0
    %697 = vmatprep.mubr.f32.mxu0 0.0
    %698 = vmatmul.mubr.f32.gmra.mrb[0].mxu0 %v614
    %v699 = vpop.f32.mrb[0].mxu0
    %v700 = vadd.f32 0.0, %v699
    %v701 = vpop.f32.mrb[0].mxu0
    %702 = vmatprep.mubr.f32.mxu0 0.0
    %703 = vmatmul.mubr.f32.gmra.mrb[0].mxu0 %v617
    %v704 = vpop.f32.mrb[0].mxu0
    %v705 = vadd.f32 0.0, %v704
    %v706 = vpop.f32.mrb[0].mxu0
    %707 = vdwg.mxu0
    %708 = vmatprep.subr.mxu0 0.0
    %709 = vmatpush1.msra.mxu0 %v108
    %710 = vmatprep.subr.mxu0 0.0
    %711 = vmatpush1.msra.mxu0 %v113
    %712 = vmatprep.subr.mxu0 0.0
    %713 = vmatpush1.msra.mxu0 0.0
    %714 = vmatprep.subr.mxu0 0.0
    %715 = vmatpush1.msra.mxu0 0.0
    %716 = vmatprep.subr.mxu0 0.0
    %717 = vmatpush1.msra.mxu0 0.0
    %718 = vmatprep.subr.mxu0 0.0
    %719 = vmatpush1.msra.mxu0 0.0
    %720 = vmatprep.subr.mxu0 0.0
    %721 = vmatpush1.msra.mxu0 0.0
    %722 = vmatprep.subr.mxu0 0.0
    %723 = vmatpush1.msra.mxu0 0.0
    %724 = vmatprep.subr.mxu0 0.0
    %725 = vmatpush1.msra.mxu0 0.0
    %726 = vmatprep.subr.mxu0 0.0
    %727 = vmatpush1.msra.mxu0 0.0
    %728 = vmatprep.subr.mxu0 0.0
    %729 = vmatpush1.msra.mxu0 0.0
    %730 = vmatprep.subr.mxu0 0.0
    %731 = vmatpush1.msra.mxu0 0.0
    %732 = vmatprep.subr.mxu0 0.0
    %733 = vmatpush1.msra.mxu0 0.0
    %734 = vmatprep.subr.mxu0 0.0
    %735 = vmatpush1.msra.mxu0 0.0
    %736 = vmatprep.subr.mxu0 0.0
    %737 = vmatpush1.msra.mxu0 0.0
    %738 = vmatprep.subr.mxu0 0.0
    %739 = vmatpush1.msra.mxu0 0.0
    %740 = vmatprep.subr.mxu0 0.0
    %741 = vmatpush1.msra.mxu0 0.0
    %742 = vmatprep.subr.mxu0 0.0
    %743 = vmatpush1.msra.mxu0 0.0
    %744 = vmatprep.subr.mxu0 0.0
    %745 = vmatpush1.msra.mxu0 0.0
    %746 = vmatprep.subr.mxu0 0.0
    %747 = vmatpush1.msra.mxu0 0.0
    %748 = vmatprep.subr.mxu0 0.0
    %749 = vmatpush1.msra.mxu0 0.0
    %750 = vmatprep.subr.mxu0 0.0
    %751 = vmatpush1.msra.mxu0 0.0
    %752 = vmatprep.subr.mxu0 0.0
    %753 = vmatpush1.msra.mxu0 0.0
    %754 = vmatprep.subr.mxu0 0.0
    %755 = vmatpush1.msra.mxu0 0.0
    %756 = vmatprep.subr.mxu0 0.0
    %757 = vmatpush1.msra.mxu0 0.0
    %758 = vmatprep.subr.mxu0 0.0
    %759 = vmatpush1.msra.mxu0 0.0
    %760 = vmatprep.subr.mxu0 0.0
    %761 = vmatpush1.msra.mxu0 0.0
    %762 = vmatprep.subr.mxu0 0.0
    %763 = vmatpush1.msra.mxu0 0.0
    %764 = vmatprep.subr.mxu0 0.0
    %765 = vmatpush1.msra.mxu0 0.0
    %766 = vmatprep.subr.mxu0 0.0
    %767 = vmatpush1.msra.mxu0 0.0
    %768 = vmatprep.subr.mxu0 0.0
    %769 = vmatpush1.msra.mxu0 0.0
    %770 = vmatprep.subr.mxu0 0.0
    %771 = vmatpush1.msra.mxu0 0.0
    %772 = vmatprep.mubr.f32.mxu0 0.0
    %773 = vmatmul.mubr.f32.gmra.mrb[0].mxu0 %v354
    %v774 = vpop.f32.mrb[0].mxu0
    %v775 = vadd.f32 0.0, %v774
    %v776 = vpop.f32.mrb[0].mxu0
    %777 = vmatprep.mubr.f32.mxu0 0.0
    %778 = vmatmul.mubr.f32.gmra.mrb[0].mxu0 %v357
    %v779 = vpop.f32.mrb[0].mxu0
    %v780 = vadd.f32 0.0, %v779
    %v781 = vpop.f32.mrb[0].mxu0
    %782 = vmatprep.mubr.f32.mxu0 0.0
    %783 = vmatmul.mubr.f32.gmra.mrb[0].mxu0 %v360
    %v784 = vpop.f32.mrb[0].mxu0
    %v785 = vadd.f32 0.0, %v784
    %v786 = vpop.f32.mrb[0].mxu0
    %787 = vmatprep.mubr.f32.mxu0 0.0
    %788 = vmatmul.mubr.f32.gmra.mrb[0].mxu0 %v363
    %v789 = vpop.f32.mrb[0].mxu0
    %v790 = vadd.f32 0.0, %v789
    %v791 = vpop.f32.mrb[0].mxu0
    %792 = vdwg.mxu0
    %v793 = vmul.f32 %v690, %v775
    %v794 = vmul.f32 %v695, %v780
    %v795 = vmul.f32 %v700, %v785
    %v796 = vmul.f32 %v705, %v790
    %v798 = vsel %vm120, %v351, 0
    %v801 = vsel %vm120, %v352, 0
    %803 = vmatprep.subr.mxu0 0.0
    %804 = vmatpush1.msra.mxu0 %v793
    %805 = vmatprep.subr.mxu0 0.0
    %806 = vmatpush1.msra.mxu0 %v794
    %807 = vmatprep.subr.mxu0 0.0
    %808 = vmatpush1.msra.mxu0 %v795
    %809 = vmatprep.subr.mxu0 0.0
    %810 = vmatpush1.msra.mxu0 %v796
    %811 = vmatprep.subr.mxu0 0.0
    %812 = vmatpush1.msra.mxu0 0.0
    %813 = vmatprep.subr.mxu0 0.0
    %814 = vmatpush1.msra.mxu0 0.0
    %815 = vmatprep.subr.mxu0 0.0
    %816 = vmatpush1.msra.mxu0 0.0
    %817 = vmatprep.subr.mxu0 0.0
    %818 = vmatpush1.msra.mxu0 0.0
    %819 = vmatprep.subr.mxu0 0.0
    %820 = vmatpush1.msra.mxu0 0.0
    %821 = vmatprep.subr.mxu0 0.0
    %822 = vmatpush1.msra.mxu0 0.0
    %823 = vmatprep.subr.mxu0 0.0
    %824 = vmatpush1.msra.mxu0 0.0
    %825 = vmatprep.subr.mxu0 0.0
    %826 = vmatpush1.msra.mxu0 0.0
    %827 = vmatprep.subr.mxu0 0.0
    %828 = vmatpush1.msra.mxu0 0.0
    %829 = vmatprep.subr.mxu0 0.0
    %830 = vmatpush1.msra.mxu0 0.0
    %831 = vmatprep.subr.mxu0 0.0
    %832 = vmatpush1.msra.mxu0 0.0
    %833 = vmatprep.subr.mxu0 0.0
    %834 = vmatpush1.msra.mxu0 0.0
    %835 = vmatprep.subr.mxu0 0.0
    %836 = vmatpush1.msra.mxu0 0.0
    %837 = vmatprep.subr.mxu0 0.0
    %838 = vmatpush1.msra.mxu0 0.0
    %839 = vmatprep.subr.mxu0 0.0
    %840 = vmatpush1.msra.mxu0 0.0
    %841 = vmatprep.subr.mxu0 0.0
    %842 = vmatpush1.msra.mxu0 0.0
    %843 = vmatprep.subr.mxu0 0.0
    %844 = vmatpush1.msra.mxu0 0.0
    %845 = vmatprep.subr.mxu0 0.0
    %846 = vmatpush1.msra.mxu0 0.0
    %847 = vmatprep.subr.mxu0 0.0
    %848 = vmatpush1.msra.mxu0 0.0
    %849 = vmatprep.subr.mxu0 0.0
    %850 = vmatpush1.msra.mxu0 0.0
    %851 = vmatprep.subr.mxu0 0.0
    %852 = vmatpush1.msra.mxu0 0.0
    %853 = vmatprep.subr.mxu0 0.0
    %854 = vmatpush1.msra.mxu0 0.0
    %855 = vmatprep.subr.mxu0 0.0
    %856 = vmatpush1.msra.mxu0 0.0
    %857 = vmatprep.subr.mxu0 0.0
    %858 = vmatpush1.msra.mxu0 0.0
    %859 = vmatprep.subr.mxu0 0.0
    %860 = vmatpush1.msra.mxu0 0.0
    %861 = vmatprep.subr.mxu0 0.0
    %862 = vmatpush1.msra.mxu0 0.0
    %863 = vmatprep.subr.mxu0 0.0
    %864 = vmatpush1.msra.mxu0 0.0
    %865 = vmatprep.subr.mxu0 0.0
    %866 = vmatpush1.msra.mxu0 0.0
    %867 = vmatprep.mubr.f32.mxu0 0.0
    %868 = vmatmul.mubr.f32.gmra.mrb[0].mxu0 %v798
    %v869 = vpop.f32.mrb[0].mxu0
    %v870 = vadd.f32 0.0, %v869
    %v871 = vpop.f32.mrb[0].mxu0
    %872 = vmatprep.mubr.f32.mxu0 0.0
    %873 = vmatmul.mubr.f32.gmra.mrb[0].mxu0 %v801
    %v874 = vpop.f32.mrb[0].mxu0
    %v875 = vadd.f32 0.0, %v874
    %v876 = vpop.f32.mrb[0].mxu0
    %877 = vdwg.mxu0
    %vm878 = vcmp.gt.f32.partialorder %v870, 0.0
    %vm879 = vcmp.gt.f32.partialorder %v875, 0.0
    %v880 = vmin.f32 %v870, 0.0
    %v881 = vmin.f32 %v875, 0.0
    %v882 = vmul.f32 %v880, 1.442695
    %v883 = vpow.pop %v882
    %v884 = vmul.f32 %v881, 1.442695
    %v885 = vpow.pop %v884
    %v886 = vsub.f32 %v883, 1.0
    %v887 = vsub.f32 %v885, 1.0
    %v888 = vsel %vm878, %v870, %v886
    %v889 = vsel %vm879, %v875, %v887
    %890 = vst.msk [vmem:[#allocation2] sm:$0xff] %vm120, %v888
    %891 = vst.msk [vmem:[#allocation2 + $0x8] sm:$0xff] %vm120, %v889
    // Predicated region
    $region34: #{tpu_custom_call.1} parent=1 // pred_check
      _
    $region35: #{tpu_custom_call.1} parent=1 // pred_check_branch
      %893 = sbr.rel (0) target = $region37
    $region36: #{tpu_custom_call.1} parent=1 // pred_region
      %s895 = ssub.s32 256, 256
      %896 = vsyncadd [#allocation3], %s895
      %s897 = sshll.u32 [#allocation2], 4
      %s898 = int_to_ptr.vmem [resolvable:$true] %s897
      %903 = dma.vmem_to_hbm [thread:$0]  %s898, 256, %s8, [#allocation3], 128, 128, 8
    $region37: #{tpu_custom_call.1} parent=1 // pred_fallthru
      _
    // Predicated region
    $region38: #{tpu_custom_call.1} parent=1 // pred_check
      _
    $region39: #{tpu_custom_call.1} parent=1 // pred_check_branch
      %905 = sbr.rel (0) target = $region41
    $region40: #{tpu_custom_call.1} parent=1 // pred_region
      %906 = dma.done [#allocation3], 256
    $region41: #{tpu_custom_call.1} parent=1 // pred_fallthru
      _
    %907 = vsyncpa [#allocation3], 1

</llo_original>
